<compile_context>
chip_gen: v7x
topology: tpu7x:2x2x1
jax: 0.10.0
libtpu: 0.0.40
codegen_flags: <defaults>
</compile_context>

<pallas_src>
import math

import jax
import jax.numpy as jnp
from jax.experimental import pallas as pl
from jax.experimental.pallas import tpu as pltpu

_TARGET_HALF_TILE_BYTES = 2 << 20          # ~2 MiB payload per half-tile
_VMEM_LIMIT_BYTES = 32 * 1024 * 1024


# ---------------------------------------------------------------- kernels ---

def _glu_kernel_leading_pair(x_ref, o_ref):
    # x_ref: (2, b_h, b_i) — row 0 = outputs half, row 1 = gate half.
    a = x_ref[0]
    g = x_ref[1].astype(jnp.float32)
    o_ref[0] = a * jax.nn.sigmoid(g).astype(a.dtype)


def _glu_kernel_two_refs(a_ref, g_ref, o_ref):
    # a_ref / g_ref / o_ref: (b_o, b_h)
    a = a_ref[...]
    g = g_ref[...].astype(jnp.float32)
    o_ref[...] = a * jax.nn.sigmoid(g).astype(a.dtype)


def _glu_kernel_middle_pair(x_ref, o_ref):
    # x_ref: (b_o, 2, b_f); o_ref: (b_o, b_f)
    xv = x_ref[...]
    a = xv[:, 0, :]
    g = xv[:, 1, :].astype(jnp.float32)
    o_ref[...] = a * jax.nn.sigmoid(g).astype(a.dtype)


# ------------------------------------------------------------- tile picks ---

def _pick_block(full: int, unit: int, cap_elems: int) -> int:
    """Capped multiple of `unit` (never exceeding `full`); pair with a cdiv grid.
    If full <= unit the full extent is returned (always a legal block)."""
    if full <= unit:
        return full
    max_units = full // unit                     # largest multiple not exceeding full
    cap_units = max(1, cap_elems // unit)
    return unit * max(1, min(max_units, cap_units))


def _pick_divisor_block(full: int, unit: int, cap_elems: int) -> int:
    """Largest multiple of `unit` that exactly divides `full` and is <= cap.
    Requires full % unit == 0 (checked by the caller)."""
    n = full // unit
    cap = max(1, min(n, cap_elems // unit))
    for d in range(cap, 0, -1):
        if n % d == 0:
            return d * unit
    return unit


def _compiler_params(n_axes: int) -> pltpu.CompilerParams:
    return pltpu.CompilerParams(
        dimension_semantics=("parallel",) * n_axes,
        vmem_limit_bytes=_VMEM_LIMIT_BYTES,
    )


# ---------------------------------------------------------------- wrapper ---

def glu_pallas(x: jax.Array, dim: int = -1) -> jax.Array:
    """torch.chunk(x, 2, dim) -> outputs * sigmoid(gate), split fused into BlockSpecs."""
    dim = dim % x.ndim
    size = x.shape[dim]
    assert size % 2 == 0, "GLU requires an even size along `dim`"
    half = size // 2

    outer = math.prod(x.shape[:dim])
    inner = math.prod(x.shape[dim + 1:])
    out_shape_final = x.shape[:dim] + (half,) + x.shape[dim + 1:]

    itemsize = jnp.dtype(x.dtype).itemsize
    sub_unit = max(8, 32 // itemsize)                    # 8 f32 / 16 bf16 / 32 int8
    target = max(128, _TARGET_HALF_TILE_BYTES // itemsize)   # elems per half-tile

    # ---- Path A: lane-dense inner axis --------------------------------------
    if inner >= 128 and inner % 128 == 0:
        # Free contiguous reshape: rows 2o / 2o+1 are the outputs / gate slabs.
        x3 = x.reshape(outer * 2, half, inner)
        # Lane block first, capped by target//sub_unit so the sublane minimum on
        # b_h can never push the tile past the budget.
        b_i = _pick_block(inner, 128, max(128, target // sub_unit))
        b_h = _pick_block(half, sub_unit, max(sub_unit, target // b_i))
        grid = (outer, pl.cdiv(half, b_h), pl.cdiv(inner, b_i))
        out3 = pl.pallas_call(
            _glu_kernel_leading_pair,
            out_shape=jax.ShapeDtypeStruct((outer, half, inner), x.dtype),
            grid=grid,
            in_specs=[pl.BlockSpec((2, b_h, b_i), lambda o, i, j: (o, i, j))],
            out_specs=pl.BlockSpec((1, b_h, b_i), lambda o, i, j: (o, i, j)),
            compiler_params=_compiler_params(3),
        )(x3)
        return out3.reshape(out_shape_final)

    # ---- Path B: GLU over the last axis (inner == 1), lane-major halves -----
    if inner == 1 and half % 128 == 0:
        x2 = x.reshape(outer, 2 * half)
        # b_h must exactly divide half so the gate spec can offset by whole blocks.
        b_h = _pick_divisor_block(half, 128, max(128, target // sub_unit))
        b_o = _pick_block(outer, sub_unit, max(sub_unit, target // b_h))
        g_off = half // b_h
        grid = (pl.cdiv(outer, b_o), half // b_h)
        out2 = pl.pallas_call(
            _glu_kernel_two_refs,
            out_shape=jax.ShapeDtypeStruct((outer, half), x.dtype),
            grid=grid,
            in_specs=[
                pl.BlockSpec((b_o, b_h), lambda i, j: (i, j)),           # outputs half
                pl.BlockSpec((b_o, b_h), lambda i, j: (i, j + g_off)),   # gate half
            ],
            out_specs=pl.BlockSpec((b_o, b_h), lambda i, j: (i, j)),
            compiler_params=_compiler_params(2),
        )(x2, x2)   # same array, disjoint column ranges -> one HBM read total
        return out2.reshape(out_shape_final)

    # ---- Path C: generic fallback (narrow / non-128 inner) ------------------
    # Flatten each half to one contiguous axis; the size-2 middle dim equals the
    # full dim so (b_o, 2, b_f) is a legal block.  The 2-row trailing tile is
    # sublane-padded in VMEM (~32 B / element), so budget the whole pipelined
    # footprint (padded input + output, x2 buffers) at ~12 MiB.
    flat = half * inner
    x3 = x.reshape(outer, 2, flat)
    target_c = max(1024, (12 << 20) // (2 * (32 + itemsize)))
    b_f = _pick_block(flat, 128, max(128, target_c // sub_unit))
    b_o = _pick_block(outer, sub_unit, max(sub_unit, target_c // b_f))
    grid = (pl.cdiv(outer, b_o), pl.cdiv(flat, b_f))
    out2 = pl.pallas_call(
        _glu_kernel_middle_pair,
        out_shape=jax.ShapeDtypeStruct((outer, flat), x.dtype),
        grid=grid,
        in_specs=[pl.BlockSpec((b_o, 2, b_f), lambda i, j: (i, 0, j))],
        out_specs=pl.BlockSpec((b_o, b_f), lambda i, j: (i, j)),
        compiler_params=_compiler_params(2),
    )(x3)
    return out2.reshape(out_shape_final)


# ------------------------------------------------------------------- test ---

if __name__ == "__main__":
    key = jax.random.PRNGKey(0)

    def check(shape, dim, k):
        x = jax.random.normal(k, shape, dtype=jnp.float32)
        out = jax.block_until_ready(glu_pallas(x, dim=dim))
        a_ref, g_ref = jnp.split(x, 2, axis=dim)
        ref = a_ref * jax.nn.sigmoid(g_ref)
        assert out.shape == ref.shape, (shape, dim, out.shape, ref.shape)
        assert jnp.allclose(out, ref, atol=1e-6, rtol=1e-6), f"mismatch {shape} dim={dim}"

    keys = jax.random.split(key, 4)
    # NCHW conv-GLU over channels, lane-dense inner (path A).
    check((2, 4, 16, 16), 1, keys[0])
    # Transformer-FFN GLU over the last dim (path B, lane-major halves, ragged rows).
    check((10, 256), -1, keys[1])
    # Narrow, non-128-multiple inner (path C, flattened per-half axis).
    check((2, 4, 7, 7), 1, keys[2])
    # Ragged flat axis (path C with cdiv grid; last block partially out-of-bounds).
    check((2, 6, 300), 1, keys[3])

    print("KERNEL_OK")
</pallas_src>

<mosaic_0001>
module attributes {stable_mosaic.version = 11 : i64} {
  func.func @_glu_kernel_leading_pair(%arg0: i32, %arg1: i32, %arg2: i32, %arg3: memref<2x2x256xf32, #tpu.memory_space<vmem>>, %arg4: memref<1x2x256xf32, #tpu.memory_space<vmem>>) attributes {dimension_semantics = [#tpu.dimension_semantics<parallel>, #tpu.dimension_semantics<parallel>, #tpu.dimension_semantics<parallel>], iteration_bounds = array<i64: 2, 1, 1>, scalar_prefetch = 0 : i64, scratch_operands = 0 : i64, tpu.core_type = #tpu.core_type<tc>, window_params = [{transform_indices = @transform_0, window_bounds = array<i64: 2, 2, 256>}, {transform_indices = @transform_1, window_bounds = array<i64: 1, 2, 256>}]} {
    %c0 = arith.constant 0 : index
    %c0_0 = arith.constant 0 : index
    %c0_1 = arith.constant 0 : index
    %0 = vector.load %arg3[%c0, %c0_0, %c0_1] : memref<2x2x256xf32, #tpu.memory_space<vmem>>, vector<1x2x256xf32>
    %1 = vector.shape_cast %0 : vector<1x2x256xf32> to vector<2x256xf32>
    %c1 = arith.constant 1 : index
    %c0_2 = arith.constant 0 : index
    %c0_3 = arith.constant 0 : index
    %2 = vector.load %arg3[%c1, %c0_2, %c0_3] : memref<2x2x256xf32, #tpu.memory_space<vmem>>, vector<1x2x256xf32>
    %3 = vector.shape_cast %2 : vector<1x2x256xf32> to vector<2x256xf32>
    %4 = arith.negf %3 : vector<2x256xf32>
    %5 = math.exp %4 : vector<2x256xf32>
    %cst = arith.constant 1.000000e+00 : f32
    %6 = vector.broadcast %cst : f32 to vector<2x256xf32>
    %7 = arith.addf %6, %5 : vector<2x256xf32>
    %8 = arith.divf %6, %7 : vector<2x256xf32>
    %9 = arith.mulf %1, %8 : vector<2x256xf32>
    %c0_4 = arith.constant 0 : index
    %c0_5 = arith.constant 0 : index
    %c0_6 = arith.constant 0 : index
    %10 = vector.load %arg4[%c0_4, %c0_5, %c0_6] : memref<1x2x256xf32, #tpu.memory_space<vmem>>, vector<1x2x256xf32>
    %11 = vector.shape_cast %10 : vector<1x2x256xf32> to vector<2x256xf32>
    %12 = vector.shape_cast %9 : vector<2x256xf32> to vector<1x2x256xf32>
    tpu.vector_store %arg4[%c0_4, %c0_5, %c0_6], %12 {strides = array<i32>} : memref<1x2x256xf32, #tpu.memory_space<vmem>>, vector<1x2x256xf32>,
    return
  }
  func.func @transform_0(%arg0: i32, %arg1: i32, %arg2: i32) -> (i32, i32, i32) {
    %c0_i32 = arith.constant 0 : i32
    return %arg0, %arg1, %arg2 : i32, i32, i32
  }
  func.func @transform_1(%arg0: i32, %arg1: i32, %arg2: i32) -> (i32, i32, i32) {
    %c0_i32 = arith.constant 0 : i32
    return %arg0, %arg1, %arg2 : i32, i32, i32
  }
}

</mosaic_0001>

<llo_original>
// kernel: tpu_custom_call.1
$region0: #{tpu_custom_call.1}
  #allocation0 [shape = 'u32[]', space=smem, size = 0x4, offset = 0x4, fixed_abs, tag = 'smem constant byte address 0x4 - core index']
  #allocation1 [shape = 'u32[144,128]{1,0:T(1,128)}', space=vmem, size = 0x12000, scoped, tag = 'internal scratch']
  %s0 = inlined_call_operand.hbm [shape: f32[4,2,256], index: 0, kind: input, shape index: {}]
  %s1 = inlined_call_operand.hbm [shape: f32[2,2,256], index: 1, kind: output, shape index: {}]
  %s2 = sld [smem:[#allocation0]]
  $region41: #{tpu_custom_call.1} parent=0
    _
  %s4 = ssub.s32 1, %s2
  %s5 = scalar_select 0, %s4, %s2
  $region1: #{tpu_custom_call.1} parent=0
    #allocation2 [shape = 'u8[8192]{0}', space=vmem, size = 0x2000, scoped, tag = 'input window, operand 0']
    #allocation3 [shape = 's32[2]{0}', space=sflag, size = 0x8, scoped, tag = 'scoped memory for tpu_custom_call.1']
    #allocation4 [shape = 's32[2]{0}', space=sflag, size = 0x8, scoped, tag = 'scoped memory for tpu_custom_call.1']
    #allocation5 [shape = 'u8[4096]{0}', space=vmem, size = 0x1000, scoped, tag = 'output window, operand 0']
    %6 = vsyncpa [#allocation3], 0
    %s7 = scalar_lea.sflag [#allocation3], 1
    %8 = vsyncpa %s7, 0
    %9 = vsyncpa [#allocation4], 0
    %s10 = scalar_lea.sflag [#allocation4], 1
    %11 = vsyncpa %s10, 0
    loop: start=0, step=1, limit=4
    $region2: #{tpu_custom_call.1} parent=1 // loop_pre_header
      _
    $region3: #{tpu_custom_call.1} parent=1 // loop_header
      %s13 = sphi 0, %s17
      %p14 = scmp.ge.s32.totalorder %s13, 4
      %s20 = sphi 0, %s39
      %s21 = sphi 0, %s35
      %s22 = sphi 0, %s31
      %s23 = sphi 0, %s20
      %s24 = sphi 0, %s21
      %s25 = sphi 0, %s22
      %s26 = sphi 0, %s23
      %s27 = sphi 0, %s24
      %s28 = sphi 0, %s25
      %s46 = sphi 0, %s48
      %s49 = sphi 0, %s46
      %s50 = sphi 0, %s49
      %s66 = sphi 0, %s50
      %s76 = sphi 0, %s78
      %s79 = sphi 0, %s76
      %s80 = sphi 0, %s79
      %s96 = sphi 0, %s80
    $region4: #{tpu_custom_call.1} parent=1 // loop_header_branch
      %16 = sbr.rel (%p14) target = $region8
    $region5: #{tpu_custom_call.1} parent=1 // loop_body
      %s18 = ssub.s32 %s13, 1
      %s19 = ssub.s32 %s13, 2
      %s29 = sadd.s32 1, %s22
      %p30 = scmp.ge.s32.totalorder %s29, 1
      %s31 = scalar_select %p30, 0, %s29
      %s32 = sadd.s32 1, %s21
      %s33 = scalar_select %p30, %s32, %s21
      %p34 = scmp.ge.s32.totalorder %s33, 1
      %s35 = scalar_select %p34, 0, %s33
      %s36 = sadd.s32 1, %s20
      %s37 = scalar_select %p34, %s36, %s20
      %p38 = scmp.ge.s32.totalorder %s37, 2
      %s39 = scalar_select %p38, 0, %s37
      %s40 = ssub.s32 %s20, %s39
      %s41 = ssub.s32 %s21, %s35
      %s42 = sor.u32 %s40, %s41
      %s43 = ssub.s32 %s22, %s31
      %s44 = sor.u32 %s42, %s43
      %p45 = scmp.eq.s32.totalorder %s44, 0
      %s47 = sadd.s32 %s46, 1
      %s48 = scalar_select %p45, %s46, %s47
      %p51 = pneg %p45
      %p52 = scmp.eq.s32.totalorder %s13, 1
      %p53 = por %p51, %p52
      %p54 = scmp.ne.s32.totalorder %s46, %s49
      %p55 = scmp.eq.s32.totalorder %s13, 0
      %p56 = por %p54, %p55
      %p57 = scmp.ne.s32.totalorder %s46, %s49
      %p58 = scmp.eq.s32.totalorder %s18, 1
      %p59 = por %p57, %p58
      %p60 = scmp.ne.s32.totalorder %s49, %s50
      %p61 = scmp.eq.s32.totalorder %s18, 0
      %p62 = por %p60, %p61
      %p63 = scmp.ne.s32.totalorder %s49, %s50
      %p64 = scmp.eq.s32.totalorder %s19, 1
      %p65 = por %p63, %p64
      %p67 = scmp.ne.s32.totalorder %s50, %s66
      %p68 = scmp.eq.s32.totalorder %s19, 0
      %p69 = por %p67, %p68
      %s70 = ssub.s32 %s20, %s39
      %s71 = ssub.s32 %s21, %s35
      %s72 = sor.u32 %s70, %s71
      %s73 = ssub.s32 %s22, %s31
      %s74 = sor.u32 %s72, %s73
      %p75 = scmp.eq.s32.totalorder %s74, 0
      %s77 = sadd.s32 %s76, 1
      %s78 = scalar_select %p75, %s76, %s77
      %p81 = pneg %p75
      %p82 = scmp.eq.s32.totalorder %s13, 1
      %p83 = por %p81, %p82
      %p84 = scmp.ne.s32.totalorder %s76, %s79
      %p85 = scmp.eq.s32.totalorder %s13, 0
      %p86 = por %p84, %p85
      %p87 = scmp.ne.s32.totalorder %s76, %s79
      %p88 = scmp.eq.s32.totalorder %s18, 1
      %p89 = por %p87, %p88
      %p90 = scmp.ne.s32.totalorder %s79, %s80
      %p91 = scmp.eq.s32.totalorder %s18, 0
      %p92 = por %p90, %p91
      %p93 = scmp.ne.s32.totalorder %s79, %s80
      %p94 = scmp.eq.s32.totalorder %s19, 1
      %p95 = por %p93, %p94
      %p97 = scmp.ne.s32.totalorder %s80, %s96
      %p98 = scmp.eq.s32.totalorder %s19, 0
      %p99 = por %p97, %p98
      %p100 = scmp.le.s32.totalorder 1, %s13
      %p101 = scmp.lt.s32.totalorder %s13, 3
      %p102 = pnand %p100, %p101
      %p103 = pneg %p102
      // Predicated region
      $region9: #{tpu_custom_call.1} parent=5 // pred_check
        _
      $region10: #{tpu_custom_call.1} parent=5 // pred_check_branch
        %105 = sbr.rel (%p102) target = $region12
      $region11: #{tpu_custom_call.1} parent=5 // pred_region
        %s106 = ssub.s32 %s13, 1
      $region12: #{tpu_custom_call.1} parent=5 // pred_fallthru
        _
      %p107 = scmp.lt.s32.totalorder %s13, 2
      // Predicated region
      $region13: #{tpu_custom_call.1} parent=5 // pred_check
        %p108 = pneg %p107
      $region14: #{tpu_custom_call.1} parent=5 // pred_check_branch
        %110 = sbr.rel (%p108) target = $region16
      $region15: #{tpu_custom_call.1} parent=5 // pred_region
        // Predicated region
        $region17: #{tpu_custom_call.1} parent=15 // pred_check
          %p111 = pneg %p56
        $region18: #{tpu_custom_call.1} parent=15 // pred_check_branch
          %113 = sbr.rel (%p111) target = $region20
        $region19: #{tpu_custom_call.1} parent=15 // pred_region
          %s114 = sand.u32 %s46, 1
          %s115 = scalar_lea.sflag [#allocation3], %s114
          %s116 = sand.u32 %s46, 1
          %s117 = smul.addr %s116, 8
          %s118 = scalar_lea.vmem [#allocation2], %s117
          %s119 = smul.u32 2, %s20
          %s120 = smul.u32 2, %s22
          %s122 = ssub.s32 128, 128
          %123 = vsyncadd %s115, %s122
          %s124 = smul.addr %s21, 2
          %s125 = sadd.s32 %s120, %s124
          %s126 = smul.addr %s119, 2
          %s127 = sadd.s32 %s125, %s126
          %s128 = smul.addr %s127, 32
          %s129 = scalar_lea.hbm %s0, %s128
          %s130 = sshll.u32 %s118, 4
          %s131 = int_to_ptr.vmem [resolvable:$true] %s130
          %136 = dma.hbm_to_vmem [thread:$0]  %s129, 128, %s131, %s115, 64, 64, 4
        $region20: #{tpu_custom_call.1} parent=15 // pred_fallthru
          _
      $region16: #{tpu_custom_call.1} parent=5 // pred_fallthru
        _
      %p137 = scmp.le.s32.totalorder 1, %s13
      %p138 = scmp.lt.s32.totalorder %s13, 3
      %p139 = pnand %p137, %p138
      %p140 = pneg %p139
      // Predicated region
      $region21: #{tpu_custom_call.1} parent=5 // pred_check
        _
      $region22: #{tpu_custom_call.1} parent=5 // pred_check_branch
        %142 = sbr.rel (%p139) target = $region24
      $region23: #{tpu_custom_call.1} parent=5 // pred_region
        %s143 = ssub.s32 %s13, 1
        %s144 = sand.u32 %s49, 1
        %s145 = scalar_lea.sflag [#allocation3], %s144
        %s146 = sand.u32 %s49, 1
        %s147 = smul.addr %s146, 8
        %s148 = scalar_lea.vmem [#allocation2], %s147
        // Predicated region
        $region25: #{tpu_custom_call.1} parent=23 // pred_check
          %p149 = pneg %p62
        $region26: #{tpu_custom_call.1} parent=23 // pred_check_branch
          %151 = sbr.rel (%p149) target = $region28
        $region27: #{tpu_custom_call.1} parent=23 // pred_region
          %152 = dma.done %s145, 128
        $region28: #{tpu_custom_call.1} parent=23 // pred_fallthru
          _
        %s153 = sand.u32 %s49, 1
        %s154 = scalar_lea.sflag [#allocation3], %s153
        %s155 = sand.u32 %s49, 1
        %s156 = smul.addr %s155, 8
        %s157 = scalar_lea.vmem [#allocation2], %s156
        %p158 = pneg %p62
        %p159 = pneg %p59
        %p160 = pneg %p92
        %p161 = pneg %p89
        %s162 = sand.u32 %s79, 1
        %s163 = scalar_lea.sflag [#allocation4], %s162
        %s164 = sand.u32 %s79, 1
        %s165 = smul.addr %s164, 4
        %s166 = scalar_lea.vmem [#allocation5], %s165
        %s167 = smul.u32 2, %s23
        %s168 = smul.u32 2, %s25
        %s169 = smul.u32 2, %s25
        %v170 = vld [vmem:[%s148] sm:$0xf]
        %s171 = scalar_lea.vmem %s148, 4 [#allocation2]
        %v172 = vld [vmem:[%s171] sm:$0xf]
        %v173 = vxor.u32 %v172, 2147483648
        %v174 = vmul.f32 %v173, 1.442695
        %v175 = vpow.pop %v174
        %v176 = vadd.f32 %v175, 1.0
        %v177 = vrcp.pop %v176
        %v178 = vmul.f32 1.0, %v177
        %v179 = vmul.f32 %v170, %v178
        %180 = vst [vmem:[%s166] sm:$0xf] %v179
        %s181 = sand.u32 %s79, 1
        %s182 = scalar_lea.sflag [#allocation4], %s181
        %s183 = sand.u32 %s79, 1
        %s184 = smul.addr %s183, 4
        %s185 = scalar_lea.vmem [#allocation5], %s184
        // Predicated region
        $region29: #{tpu_custom_call.1} parent=23 // pred_check
          %p186 = pneg %p89
        $region30: #{tpu_custom_call.1} parent=23 // pred_check_branch
          %188 = sbr.rel (%p186) target = $region32
        $region31: #{tpu_custom_call.1} parent=23 // pred_region
          %s189 = smul.u32 2, %s25
          %s191 = ssub.s32 64, 64
          %192 = vsyncadd %s182, %s191
          %s193 = smul.addr %s24, 2
          %s194 = sadd.s32 %s189, %s193
          %s195 = smul.addr %s23, 2
          %s196 = sadd.s32 %s194, %s195
          %s197 = smul.addr %s196, 32
          %s198 = scalar_lea.hbm %s1, %s197
          %s200 = sshll.u32 %s185, 4
          %s201 = int_to_ptr.vmem [resolvable:$true] %s200
          %203 = dma.vmem_to_hbm [thread:$0]  %s201, 64, %s198, %s182
        $region32: #{tpu_custom_call.1} parent=23 // pred_fallthru
          _
      $region24: #{tpu_custom_call.1} parent=5 // pred_fallthru
        _
      %p204 = scmp.le.s32.totalorder 2, %s13
      // Predicated region
      $region33: #{tpu_custom_call.1} parent=5 // pred_check
        %p205 = pneg %p204
      $region34: #{tpu_custom_call.1} parent=5 // pred_check_branch
        %207 = sbr.rel (%p205) target = $region36
      $region35: #{tpu_custom_call.1} parent=5 // pred_region
        %s208 = ssub.s32 %s13, 2
        // Predicated region
        $region37: #{tpu_custom_call.1} parent=35 // pred_check
          %p209 = pneg %p95
        $region38: #{tpu_custom_call.1} parent=35 // pred_check_branch
          %211 = sbr.rel (%p209) target = $region40
        $region39: #{tpu_custom_call.1} parent=35 // pred_region
          %s212 = sand.u32 %s80, 1
          %s213 = scalar_lea.sflag [#allocation4], %s212
          %s214 = sand.u32 %s80, 1
          %s215 = smul.addr %s214, 4
          %s216 = scalar_lea.vmem [#allocation5], %s215
          %217 = dma.done %s213, 64
        $region40: #{tpu_custom_call.1} parent=35 // pred_fallthru
          _
      $region36: #{tpu_custom_call.1} parent=5 // pred_fallthru
        _
    $region6: #{tpu_custom_call.1} parent=1 // loop_footer
      %s17 = sadd.s32 1, %s13
    $region7: #{tpu_custom_call.1} parent=1 // loop_footer_branch
      %12 = sbr.rel target = $region3
    $region8: #{tpu_custom_call.1} parent=1 // loop_exit
      _
    %218 = vsyncpa [#allocation3], 1
    %s219 = scalar_lea.sflag [#allocation3], 1
    %220 = vsyncpa %s219, 1
    %221 = vsyncpa [#allocation4], 1
    %s222 = scalar_lea.sflag [#allocation4], 1
    %223 = vsyncpa %s222, 1

</llo_original>
